<compile_context>
chip_gen: v7x
topology: tpu7x:2x2x1
jax: 0.10.0
libtpu: 0.0.40
codegen_flags: <defaults>
</compile_context>

<pallas_src>
import jax
import jax.numpy as jnp
import numpy as np
from jax.experimental import pallas as pl
from jax.experimental.pallas import tpu as pltpu


def _scale_kernel(x_ref, o_ref):
    # x_ref: (TR, L) uint8 tile    o_ref: (TR, L) float32 tile
    o_ref[...] = x_ref[...].astype(jnp.float32) * jnp.float32(1.0 / 255.0)


# ~1M elements per block: 1 MiB u8 in + 4 MiB f32 out, x2 double buffering
# ~= 10 MiB of VMEM -> safe on every generation, near the HBM roofline.
_TARGET_BLOCK_ELEMS = 1024 * 1024


def _pre_process_impl(img_hwc_u8: jax.Array) -> jax.Array:
    H, W, C = img_hwc_u8.shape
    total = C * H * W

    # Layout only: HWC -> CHW at uint8 width (no arithmetic), flatten.
    flat = jnp.transpose(img_hwc_u8, (2, 0, 1)).reshape(-1)

    # Pick a lane width that is a multiple of 128 and (if possible) divides the
    # element count exactly; otherwise pad the flat view up to a 128 multiple.
    lane = None
    for cand in (1024, 512, 256, 128):
        if total % cand == 0:
            lane = cand
            break
    padded_total = total
    if lane is None:
        lane = 128
        pad = (-total) % lane
        padded_total = total + pad
        flat = jnp.pad(flat, (0, pad))

    rows = padded_total // lane
    x2d = flat.reshape(rows, lane)

    # Row-block size: multiple of 32 (u8 sublane packing: one vreg is (32,128)
    # at 8-bit) unless a single block covers the whole row axis.
    tr = _TARGET_BLOCK_ELEMS // lane
    if tr >= rows:
        tr = rows
    else:
        tr = max(32, (tr // 32) * 32)
    grid_r = pl.cdiv(rows, tr)

    out2d = pl.pallas_call(
        _scale_kernel,
        out_shape=jax.ShapeDtypeStruct((rows, lane), jnp.float32),
        grid=(grid_r,),
        in_specs=[pl.BlockSpec((tr, lane), lambda r: (r, 0))],
        out_specs=pl.BlockSpec((tr, lane), lambda r: (r, 0)),
        compiler_params=pltpu.CompilerParams(
            dimension_semantics=("parallel",),
            vmem_limit_bytes=64 << 20,
        ),
    )(x2d)

    out_flat = out2d.reshape(-1)
    if padded_total != total:
        out_flat = out_flat[:total]
    return out_flat.reshape(C, H, W)


# jit so the uint8 transpose / reshape / (pad) and the post-slice fuse around
# the pallas_call instead of dispatching as separate eager ops.
pre_process = jax.jit(_pre_process_impl)


def _reference(img_hwc_u8: jax.Array) -> np.ndarray:
    return np.transpose(
        np.asarray(img_hwc_u8).astype(np.float32) / 255.0, (2, 0, 1)
    )


if __name__ == "__main__":
    key = jax.random.PRNGKey(0)
    k1, k2 = jax.random.split(key)

    # Case 1: small RGB image whose element count is a 128 multiple
    # (lane-dense path, no padding).
    H, W, C = 16, 16, 3
    img1 = jax.random.randint(k1, (H, W, C), 0, 256, dtype=jnp.int32).astype(
        jnp.uint8
    )
    y1 = jax.block_until_ready(pre_process(img1))
    assert y1.shape == (C, H, W), y1.shape
    assert y1.dtype == jnp.float32, y1.dtype
    np.testing.assert_allclose(np.asarray(y1), _reference(img1),
                               rtol=1e-6, atol=1e-6)

    # Case 2: odd spatial size (exercises the padded lane-dense path).
    H2, W2, C2 = 17, 13, 3
    img2 = jax.random.randint(k2, (H2, W2, C2), 0, 256, dtype=jnp.int32).astype(
        jnp.uint8
    )
    y2 = jax.block_until_ready(pre_process(img2))
    assert y2.shape == (C2, H2, W2), y2.shape
    assert y2.dtype == jnp.float32, y2.dtype
    np.testing.assert_allclose(np.asarray(y2), _reference(img2),
                               rtol=1e-6, atol=1e-6)

    print("KERNEL_OK")
</pallas_src>

<mosaic_0001>
module attributes {stable_mosaic.version = 11 : i64} {
  func.func @_scale_kernel(%arg0: i32, %arg1: memref<3x256xi8, #tpu.memory_space<vmem>>, %arg2: memref<3x256xf32, #tpu.memory_space<vmem>>) attributes {dimension_semantics = [#tpu.dimension_semantics<parallel>], iteration_bounds = array<i64: 1>, scalar_prefetch = 0 : i64, scratch_operands = 0 : i64, tpu.core_type = #tpu.core_type<tc>, window_params = [{transform_indices = @transform_0, window_bounds = array<i64: 3, 256>}, {transform_indices = @transform_1, window_bounds = array<i64: 3, 256>}]} {
    %c0 = arith.constant 0 : index
    %c0_0 = arith.constant 0 : index
    %0 = vector.load %arg1[%c0, %c0_0] : memref<3x256xi8, #tpu.memory_space<vmem>>, vector<3x256xi8>
    %1 = arith.uitofp %0 : vector<3x256xi8> to vector<3x256xf32>
    %cst = arith.constant 0.00392156886 : f32
    %2 = vector.broadcast %cst : f32 to vector<3x256xf32>
    %3 = arith.mulf %1, %2 : vector<3x256xf32>
    %c0_1 = arith.constant 0 : index
    %c0_2 = arith.constant 0 : index
    %4 = vector.load %arg2[%c0_1, %c0_2] : memref<3x256xf32, #tpu.memory_space<vmem>>, vector<3x256xf32>
    tpu.vector_store %arg2[%c0_1, %c0_2], %3 {strides = array<i32>} : memref<3x256xf32, #tpu.memory_space<vmem>>, vector<3x256xf32>,
    return
  }
  func.func @transform_0(%arg0: i32) -> (i32, i32) {
    %c0_i32 = arith.constant 0 : i32
    %c0_i32_0 = arith.constant 0 : i32
    return %arg0, %c0_i32 : i32, i32
  }
  func.func @transform_1(%arg0: i32) -> (i32, i32) {
    %c0_i32 = arith.constant 0 : i32
    %c0_i32_0 = arith.constant 0 : i32
    return %arg0, %c0_i32 : i32, i32
  }
}

</mosaic_0001>

<llo_original>
// kernel: _pre_process_impl.1
$region0: #{_pre_process_impl.1}
  #allocation0 [shape = 'u32[]', space=smem, size = 0x4, offset = 0x4, fixed_abs, tag = 'smem constant byte address 0x4 - core index']
  #allocation1 [shape = 'u32[144,128]{1,0:T(1,128)}', space=vmem, size = 0x12000, scoped, tag = 'internal scratch']
  %s0 = inlined_call_operand.hbm [shape: u8[3,256], index: 0, kind: input, shape index: {}]
  %s1 = inlined_call_operand.hbm [shape: f32[3,256], index: 1, kind: output, shape index: {}]
  %s2 = sld [smem:[#allocation0]]
  $region18: #{_pre_process_impl.1} parent=0
    _
  %s4 = ssub.s32 1, %s2
  %s5 = scalar_select 0, %s4, %s2
  $region1: #{_pre_process_impl.1} parent=0
    #allocation2 [shape = 'u8[1024]{0}', space=vmem, size = 0x400, scoped, tag = 'input window, operand 0, single buffered']
    #allocation3 [shape = 's32[1]{0}', space=sflag, size = 0x4, scoped, tag = 'scoped memory for _pre_process_impl.1']
    #allocation4 [shape = 's32[1]{0}', space=sflag, size = 0x4, scoped, tag = 'scoped memory for _pre_process_impl.1']
    #allocation5 [shape = 'u8[4096]{0}', space=vmem, size = 0x1000, scoped, tag = 'output window, operand 0, single buffered']
    %6 = vsyncpa [#allocation3], 0
    %7 = vsyncpa [#allocation4], 0
    // Predicated region
    $region2: #{_pre_process_impl.1} parent=1 // pred_check
      _
    $region3: #{_pre_process_impl.1} parent=1 // pred_check_branch
      %9 = sbr.rel (0) target = $region5
    $region4: #{_pre_process_impl.1} parent=1 // pred_region
      %s11 = ssub.s32 32, 32
      %12 = vsyncadd [#allocation3], %s11
      %s14 = sshll.u32 [#allocation2], 4
      %s15 = int_to_ptr.vmem [resolvable:$true] %s14
      %17 = dma.hbm_to_vmem [thread:$0]  %s0, 32, %s15, [#allocation3]
    $region5: #{_pre_process_impl.1} parent=1 // pred_fallthru
      _
    // Predicated region
    $region6: #{_pre_process_impl.1} parent=1 // pred_check
      _
    $region7: #{_pre_process_impl.1} parent=1 // pred_check_branch
      %19 = sbr.rel (0) target = $region9
    $region8: #{_pre_process_impl.1} parent=1 // pred_region
      %20 = dma.done [#allocation3], 32
    $region9: #{_pre_process_impl.1} parent=1 // pred_fallthru
      _
    %v21 = vld [vmem:[#allocation2] sm:$0x3]
    %v22 = vunpack.c.0.s8 %v21
    %v23 = vand.u32 %v22, 255
    %v24 = vcvt.s32.f32 %v23
    %v25 = vmul.f32 %v24, 0.003921569
    %26 = vst [vmem:[#allocation5] sm:$0x77] %v25
    // Predicated region
    $region10: #{_pre_process_impl.1} parent=1 // pred_check
      _
    $region11: #{_pre_process_impl.1} parent=1 // pred_check_branch
      %28 = sbr.rel (0) target = $region13
    $region12: #{_pre_process_impl.1} parent=1 // pred_region
      %s30 = ssub.s32 128, 128
      %31 = vsyncadd [#allocation4], %s30
      %s33 = sshll.u32 [#allocation5], 4
      %s34 = int_to_ptr.vmem [resolvable:$true] %s33
      %36 = dma.vmem_to_hbm [thread:$0]  %s34, 128, %s1, [#allocation4]
    $region13: #{_pre_process_impl.1} parent=1 // pred_fallthru
      _
    // Predicated region
    $region14: #{_pre_process_impl.1} parent=1 // pred_check
      _
    $region15: #{_pre_process_impl.1} parent=1 // pred_check_branch
      %38 = sbr.rel (0) target = $region17
    $region16: #{_pre_process_impl.1} parent=1 // pred_region
      %39 = dma.done [#allocation4], 128
    $region17: #{_pre_process_impl.1} parent=1 // pred_fallthru
      _
    %40 = vsyncpa [#allocation3], 1
    %41 = vsyncpa [#allocation4], 1

</llo_original>
